<compile_context>
chip_gen: v6e
topology: v6e:2x2x1
jax: 0.10.0
libtpu: 0.0.40
codegen_flags: <defaults>
</compile_context>

<pallas_src>
import functools

import jax
import jax.numpy as jnp
from jax.experimental import pallas as pl
from jax.experimental.pallas import tpu as pltpu

LANE = 128
SUBLANE = 8
# (2048, 128) f32 block = 1 MiB -> near the HBM roofline plateau while keeping
# double-buffered pipeline VMEM (weighted path: 3 arrays x 2 bufs ~= 6 MiB)
# comfortably inside v5e's 16 MiB default scoped VMEM and v7x's 64 MiB physical.
TILE_ROWS_TARGET = 2048


def _robust_val(x_f32, eps, p):
    """(x^2 + eps^2)^p with compile-time specialization of the power."""
    y = x_f32 * x_f32 + jnp.float32(eps * eps)
    if p == 0.5:
        return jnp.sqrt(y)          # single EUP op instead of exp(p*log(.))
    if p == 1.0:
        return y                    # no EUP work at all
    return jnp.power(y, jnp.float32(p))


# ----------------------- elementwise (reduction='none') ----------------------
def _map_kernel(x_ref, o_ref, *, eps, p, loss_weight):
    x = x_ref[...].astype(jnp.float32)
    o_ref[...] = (jnp.float32(loss_weight) * _robust_val(x, eps, p)).astype(o_ref.dtype)


def _map_weighted_kernel(x_ref, w_ref, o_ref, *, eps, p, loss_weight):
    x = x_ref[...].astype(jnp.float32)
    w = w_ref[...].astype(jnp.float32)
    val = _robust_val(x, eps, p) * w
    o_ref[...] = (jnp.float32(loss_weight) * val).astype(o_ref.dtype)


# ----------------------- fused reduction ('mean'/'sum') ----------------------
def _mask_pad(val, i, tile_rows, n_valid):
    """Zero out the padded tail so it does not bias the fused sum."""
    if n_valid is None:
        return val
    base = i * (tile_rows * LANE)
    row = jax.lax.broadcasted_iota(jnp.int32, val.shape, 0)
    lane = jax.lax.broadcasted_iota(jnp.int32, val.shape, 1)
    return jnp.where(base + row * LANE + lane < n_valid, val, 0.0)


def _reduce_kernel(x_ref, o_ref, *, eps, p, tile_rows, n_valid):
    i = pl.program_id(0)

    @pl.when(i == 0)
    def _():
        o_ref[...] = jnp.zeros_like(o_ref)

    x = x_ref[...].astype(jnp.float32)
    val = _mask_pad(_robust_val(x, eps, p), i, tile_rows, n_valid)
    o_ref[...] += jnp.sum(val, axis=0, keepdims=True)


def _reduce_weighted_kernel(x_ref, w_ref, o_ref, *, eps, p, tile_rows, n_valid):
    i = pl.program_id(0)

    @pl.when(i == 0)
    def _():
        o_ref[...] = jnp.zeros_like(o_ref)

    x = x_ref[...].astype(jnp.float32)
    w = w_ref[...].astype(jnp.float32)
    val = _mask_pad(_robust_val(x, eps, p) * w, i, tile_rows, n_valid)
    o_ref[...] += jnp.sum(val, axis=0, keepdims=True)


# ----------------------------- host-side glue --------------------------------
def _to_slab(x, tile_rows_target=TILE_ROWS_TARGET):
    """Flatten + pad + reshape to (rows, 128). Returns (slab, n_valid, tile_rows)."""
    flat = x.reshape(-1)
    n = flat.shape[0]
    rows = -(-n // LANE)
    rows = -(-rows // SUBLANE) * SUBLANE
    tr = min(tile_rows_target, rows)
    rows = -(-rows // tr) * tr               # <= ~1 MiB of extra pad, worst case
    pad = rows * LANE - n
    if pad:
        flat = jnp.pad(flat, (0, pad))
    return flat.reshape(rows, LANE), n, tr


def zero_smoothness(pred, weight=None, *, eps=0.001, p=0.5, loss_weight=1.0,
                    reduction="none", avg_factor=None):
    """JAX/Pallas equivalent of ZeroSmoothness.forward."""
    assert reduction in ("none", "mean", "sum")
    orig_shape = pred.shape
    orig_dtype = pred.dtype

    if weight is not None and tuple(weight.shape) != tuple(orig_shape):
        # TODO(synk): broadcast lower-rank weights inside the kernel instead of
        # materializing a full-size array in HBM here.
        weight = jnp.broadcast_to(weight, orig_shape)

    x2d, n, tr = _to_slab(pred)
    rows = x2d.shape[0]
    grid = (rows // tr,)
    blk = pl.BlockSpec((tr, LANE), lambda i: (i, 0))

    if reduction == "none":
        # Streaming elementwise path; output written directly in orig dtype.
        out_shape = jax.ShapeDtypeStruct((rows, LANE), orig_dtype)
        if weight is None:
            kern = functools.partial(_map_kernel, eps=eps, p=p,
                                     loss_weight=loss_weight)
            in_specs, args = [blk], (x2d,)
        else:
            w2d, _, _ = _to_slab(weight)
            kern = functools.partial(_map_weighted_kernel, eps=eps, p=p,
                                     loss_weight=loss_weight)
            in_specs, args = [blk, blk], (x2d, w2d)
        loss2d = pl.pallas_call(
            kern,
            out_shape=out_shape,
            grid=grid,
            in_specs=in_specs,
            out_specs=blk,
            compiler_params=pltpu.CompilerParams(
                dimension_semantics=("parallel",)),
        )(*args)
        return loss2d.reshape(-1)[:n].reshape(orig_shape)

    # -------- fused 'mean'/'sum' reduction (read-only HBM traffic) ----------
    if avg_factor is not None and reduction == "sum":
        raise ValueError("avg_factor can not be used with reduction='sum'")

    n_valid = None if rows * LANE == n else n
    out_shape = jax.ShapeDtypeStruct((1, LANE), jnp.float32)
    out_spec = pl.BlockSpec((1, LANE), lambda i: (0, 0))
    if weight is None:
        kern = functools.partial(_reduce_kernel, eps=eps, p=p,
                                 tile_rows=tr, n_valid=n_valid)
        in_specs, args = [blk], (x2d,)
    else:
        w2d, _, _ = _to_slab(weight)
        kern = functools.partial(_reduce_weighted_kernel, eps=eps, p=p,
                                 tile_rows=tr, n_valid=n_valid)
        in_specs, args = [blk, blk], (x2d, w2d)

    partial_lanes = pl.pallas_call(
        kern,
        out_shape=out_shape,
        grid=grid,
        in_specs=in_specs,
        out_specs=out_spec,
        compiler_params=pltpu.CompilerParams(
            dimension_semantics=("arbitrary",)),
    )(*args)

    total = jnp.float32(loss_weight) * jnp.sum(partial_lanes)  # fold 128 lanes
    if reduction == "mean":
        denom = jnp.float32(n) if avg_factor is None else avg_factor
        total = total / denom
    return total.astype(orig_dtype)


if __name__ == "__main__":
    key = jax.random.PRNGKey(0)
    k1, k2, k3 = jax.random.split(key, 3)

    eps, p, loss_weight = 0.001, 0.5, 1.0

    # --- reduction='none', no weight (default forward) ---
    pred = jax.random.normal(k1, (2, 4, 16, 16), dtype=jnp.float32)
    weight = jax.random.uniform(k2, (2, 4, 16, 16), dtype=jnp.float32)

    out = zero_smoothness(pred, eps=eps, p=p, loss_weight=loss_weight,
                          reduction="none")
    out = jax.block_until_ready(out)
    ref = loss_weight * jnp.power(pred * pred + eps * eps, p)
    assert out.shape == pred.shape
    assert jnp.allclose(out, ref, rtol=1e-5, atol=1e-6)

    # --- weighted + fused mean reduction ---
    out_w = zero_smoothness(pred, weight=weight, eps=eps, p=p,
                            loss_weight=loss_weight, reduction="mean")
    out_w = jax.block_until_ready(out_w)
    ref_w = jnp.mean(loss_weight * jnp.power(pred * pred + eps * eps, p) * weight)
    assert jnp.allclose(out_w, ref_w, rtol=1e-5, atol=1e-5)

    # --- ragged size (exercises the padded-tail mask) + fused sum ---
    pred_r = jax.random.normal(k3, (2, 3, 15, 17), dtype=jnp.float32)
    out_s = zero_smoothness(pred_r, eps=eps, p=p, loss_weight=loss_weight,
                            reduction="sum")
    out_s = jax.block_until_ready(out_s)
    ref_s = jnp.sum(loss_weight * jnp.power(pred_r * pred_r + eps * eps, p))
    assert jnp.allclose(out_s, ref_s, rtol=1e-5, atol=1e-4)

    print("KERNEL_OK")
</pallas_src>

<mosaic_0001>
module attributes {stable_mosaic.version = 11 : i64} {
  func.func @_map_kernel(%arg0: i32, %arg1: memref<16x128xf32, #tpu.memory_space<vmem>>, %arg2: memref<16x128xf32, #tpu.memory_space<vmem>>) attributes {dimension_semantics = [#tpu.dimension_semantics<parallel>], iteration_bounds = array<i64: 1>, scalar_prefetch = 0 : i64, scratch_operands = 0 : i64, tpu.core_type = #tpu.core_type<tc>, window_params = [{transform_indices = @transform_0, window_bounds = array<i64: 16, 128>}, {transform_indices = @transform_1, window_bounds = array<i64: 16, 128>}]} {
    %c0 = arith.constant 0 : index
    %c0_0 = arith.constant 0 : index
    %0 = vector.load %arg1[%c0, %c0_0] : memref<16x128xf32, #tpu.memory_space<vmem>>, vector<16x128xf32>
    %1 = arith.mulf %0, %0 : vector<16x128xf32>
    %cst = arith.constant 9.99999997E-7 : f32
    %2 = vector.broadcast %cst : f32 to vector<16x128xf32>
    %3 = arith.addf %1, %2 : vector<16x128xf32>
    %4 = math.sqrt %3 : vector<16x128xf32>
    %cst_1 = arith.constant 1.000000e+00 : f32
    %5 = vector.broadcast %cst_1 : f32 to vector<16x128xf32>
    %6 = arith.mulf %5, %4 : vector<16x128xf32>
    %c0_2 = arith.constant 0 : index
    %c0_3 = arith.constant 0 : index
    %7 = vector.load %arg2[%c0_2, %c0_3] : memref<16x128xf32, #tpu.memory_space<vmem>>, vector<16x128xf32>
    tpu.vector_store %arg2[%c0_2, %c0_3], %6 {strides = array<i32>} : memref<16x128xf32, #tpu.memory_space<vmem>>, vector<16x128xf32>,
    return
  }
  func.func @transform_0(%arg0: i32) -> (i32, i32) {
    %c0_i32 = arith.constant 0 : i32
    %c0_i32_0 = arith.constant 0 : i32
    return %arg0, %c0_i32 : i32, i32
  }
  func.func @transform_1(%arg0: i32) -> (i32, i32) {
    %c0_i32 = arith.constant 0 : i32
    %c0_i32_0 = arith.constant 0 : i32
    return %arg0, %c0_i32 : i32, i32
  }
}

</mosaic_0001>

<llo_original>
// kernel: tpu_custom_call.1
$region0: #{tpu_custom_call.1}
  #allocation0 [shape = 'u32[]', space=smem, size = 0x4, offset = 0x4, fixed_abs, tag = 'smem constant byte address 0x4 - core index']
  #allocation1 [shape = 'u32[144,128]{1,0:T(1,128)}', space=vmem, size = 0x12000, scoped, tag = 'internal scratch']
  %s0 = inlined_call_operand.hbm [shape: f32[16,128], index: 0, kind: input, shape index: {}]
  %s1 = inlined_call_operand.hbm [shape: f32[16,128], index: 1, kind: output, shape index: {}]
  %s2 = sld [smem:[#allocation0]]
  $region18: #{tpu_custom_call.1} parent=0
    _
  %s4 = ssub.s32 1, %s2
  %s5 = scalar_select 0, %s4, %s2
  $region1: #{tpu_custom_call.1} parent=0
    #allocation2 [shape = 'u8[8192]{0}', space=vmem, size = 0x2000, scoped, tag = 'input window, operand 0, single buffered']
    #allocation3 [shape = 's32[1]{0}', space=sflag, size = 0x4, scoped, tag = 'scoped memory for tpu_custom_call.1']
    #allocation4 [shape = 's32[1]{0}', space=sflag, size = 0x4, scoped, tag = 'scoped memory for tpu_custom_call.1']
    #allocation5 [shape = 'u8[8192]{0}', space=vmem, size = 0x2000, scoped, tag = 'output window, operand 0, single buffered']
    %6 = vsyncpa [#allocation3], 0
    %7 = vsyncpa [#allocation4], 0
    // Predicated region
    $region2: #{tpu_custom_call.1} parent=1 // pred_check
      _
    $region3: #{tpu_custom_call.1} parent=1 // pred_check_branch
      %9 = sbr.rel (0) target = $region5
    $region4: #{tpu_custom_call.1} parent=1 // pred_region
      %s11 = ssub.s32 256, 256
      %12 = vsyncadd [#allocation3], %s11
      %s13 = sshll.u32 [#allocation2], 4
      %s14 = int_to_ptr.vmem [resolvable:$true] %s13
      %19 = dma.hbm_to_vmem [thread:$0]  %s0, 256, %s14, [#allocation3], 128, 128, 8
    $region5: #{tpu_custom_call.1} parent=1 // pred_fallthru
      _
    // Predicated region
    $region6: #{tpu_custom_call.1} parent=1 // pred_check
      _
    $region7: #{tpu_custom_call.1} parent=1 // pred_check_branch
      %21 = sbr.rel (0) target = $region9
    $region8: #{tpu_custom_call.1} parent=1 // pred_region
      %22 = dma.done [#allocation3], 256
    $region9: #{tpu_custom_call.1} parent=1 // pred_fallthru
      _
    %v23 = vld [vmem:[#allocation2] sm:$0xff]
    %v24 = vld [vmem:[#allocation2 + $0x8] sm:$0xff]
    %v25 = vmul.f32 %v23, %v23
    %v26 = vmul.f32 %v24, %v24
    %v27 = vadd.f32 %v25, 1e-06
    %v28 = vadd.f32 %v26, 1e-06
    %v29 = vrsqrt.pop %v27
    %v30 = vmul.f32 %v27, %v29
    %vm31 = vcmp.eq.f32.partialorder %v27, inf
    %v32 = vsel %vm31, %v27, %v30
    %vm33 = vcmp.eq.f32.partialorder %v27, 0.0
    %v34 = vand.u32 %v27, 2147483648
    %v35 = vsel %vm33, %v34, %v32
    %v36 = vrsqrt.pop %v28
    %v37 = vmul.f32 %v28, %v36
    %vm38 = vcmp.eq.f32.partialorder %v28, inf
    %v39 = vsel %vm38, %v28, %v37
    %vm40 = vcmp.eq.f32.partialorder %v28, 0.0
    %v41 = vand.u32 %v28, 2147483648
    %v42 = vsel %vm40, %v41, %v39
    %43 = vst [vmem:[#allocation5] sm:$0xff] %v35
    %44 = vst [vmem:[#allocation5 + $0x8] sm:$0xff] %v42
    // Predicated region
    $region10: #{tpu_custom_call.1} parent=1 // pred_check
      _
    $region11: #{tpu_custom_call.1} parent=1 // pred_check_branch
      %46 = sbr.rel (0) target = $region13
    $region12: #{tpu_custom_call.1} parent=1 // pred_region
      %s48 = ssub.s32 256, 256
      %49 = vsyncadd [#allocation4], %s48
      %s50 = sshll.u32 [#allocation5], 4
      %s51 = int_to_ptr.vmem [resolvable:$true] %s50
      %56 = dma.vmem_to_hbm [thread:$0]  %s51, 256, %s1, [#allocation4], 128, 128, 8
    $region13: #{tpu_custom_call.1} parent=1 // pred_fallthru
      _
    // Predicated region
    $region14: #{tpu_custom_call.1} parent=1 // pred_check
      _
    $region15: #{tpu_custom_call.1} parent=1 // pred_check_branch
      %58 = sbr.rel (0) target = $region17
    $region16: #{tpu_custom_call.1} parent=1 // pred_region
      %59 = dma.done [#allocation4], 256
    $region17: #{tpu_custom_call.1} parent=1 // pred_fallthru
      _
    %60 = vsyncpa [#allocation3], 1
    %61 = vsyncpa [#allocation4], 1

</llo_original>
